<compile_context>
chip_gen: v7x
topology: tpu7x:2x2x1
jax: 0.10.0
libtpu: 0.0.40
codegen_flags: <defaults>
</compile_context>

<pallas_src>
import jax
import jax.numpy as jnp
from jax import lax
from jax.experimental import pallas as pl
from jax.experimental.pallas import tpu as pltpu

_BN_EPS = 1e-5


def _round_up(x, m):
    return ((x + m - 1) // m) * m


def _pick_hw_tile(hw, cap=512):
    """Largest HW tile <= cap that divides hw and is a multiple of 8 (or hw)."""
    if hw <= cap:
        return hw
    for t in range(cap - cap % 8, 7, -8):
        if hw % t == 0:
            return t
    return hw


# ---------------------------------------------------------------------------
# Kernel 1: grouped (im2col) matmul + folded-BN scale/bias + ReLU epilogue.
# One launch covers every group via the leading grid axis.  bf16 in, bf16 out,
# f32 MXU accumulation.  K = 9*Cin_g fits in one block -> no reduction axis.
# ---------------------------------------------------------------------------
def _conv_mm_kernel(a_ref, w_ref, s_ref, b_ref, o_ref):
    y = jnp.dot(a_ref[...], w_ref[...], preferred_element_type=jnp.float32)
    y = y * s_ref[...] + b_ref[...]
    o_ref[...] = jnp.maximum(y, 0.0).astype(o_ref.dtype)


def grouped_matmul_bn_relu(a, w, scale, bias, *, tm=512):
    """relu((a[g] @ w[g]) * scale[g] + bias[g]) for each group g.

    a: (G, M, K) bf16, w: (G, K, Ng) bf16, scale/bias: (G, 1, Ng) f32.
    Returns (G, M, Ng) bf16.
    """
    g_dim, m_dim, k_dim = a.shape
    n_dim = w.shape[2]

    tm = min(tm, _round_up(m_dim, 8))
    mp = _round_up(m_dim, tm)
    if mp != m_dim:
        # NOTE: padded rows produce relu(0*s + b) garbage; sliced off below.
        a = jnp.pad(a, ((0, 0), (0, mp - m_dim), (0, 0)))

    if n_dim % 256 == 0:        # feed the full 256-wide MXU on v6e/v7x
        tn = 256
    elif n_dim % 128 == 0:      # lane-dense output tiles (unmasked vst)
        tn = 128
    else:
        tn = n_dim
    tk = k_dim                  # single K block: no accumulator / no K axis

    out = pl.pallas_call(
        _conv_mm_kernel,
        out_shape=jax.ShapeDtypeStruct((g_dim, mp, n_dim), jnp.bfloat16),
        grid_spec=pltpu.PrefetchScalarGridSpec(
            num_scalar_prefetch=0,
            grid=(g_dim, mp // tm, n_dim // tn),
            in_specs=[
                pl.BlockSpec((None, tm, tk), lambda g, i, j: (g, i, 0)),
                pl.BlockSpec((None, tk, tn), lambda g, i, j: (g, 0, j)),
                pl.BlockSpec((None, 1, tn), lambda g, i, j: (g, 0, j)),
                pl.BlockSpec((None, 1, tn), lambda g, i, j: (g, 0, j)),
            ],
            out_specs=pl.BlockSpec((None, tm, tn), lambda g, i, j: (g, i, j)),
        ),
        compiler_params=pltpu.CompilerParams(
            dimension_semantics=("parallel", "parallel", "parallel")),
    )(a, w, scale, bias)
    return out[:, :m_dim]


# ---------------------------------------------------------------------------
# Kernel 2a: HW-tiled GAP reduction (over paths + spatial) + compress
# (Linear + folded BN1d + ReLU) + per-path 1x1 projections + softmax over
# paths -> attention weights (N, P, C).  HW is the last ("arbitrary") axis;
# the GAP accumulator lives in a small VMEM scratch.
# ---------------------------------------------------------------------------
def _make_attention_kernel(paths, inv_hw):
    def kernel(f_ref, wc_ref, sc_ref, bc_ref, wp_ref, bp_ref, att_ref, gap_ref):
        # f_ref: (P, t_hw, C) bf16   wc: (C, R)   sc/bc: (1, R)
        # wp: (P, R, C)   bp: (P, 1, C)   att_ref: (P, C)   gap_ref: (1, C) f32
        @pl.when(pl.program_id(1) == 0)
        def _init():
            gap_ref[...] = jnp.zeros_like(gap_ref)

        s = jnp.sum(f_ref[0].astype(jnp.float32), axis=0, keepdims=True)
        for p in range(1, paths):
            s = s + jnp.sum(f_ref[p].astype(jnp.float32), axis=0, keepdims=True)
        gap_ref[...] += s

        @pl.when(pl.program_id(1) == pl.num_programs(1) - 1)
        def _finalize():
            gap = gap_ref[...] * inv_hw                                 # (1, C)
            # compress: Linear + folded BatchNorm1d + ReLU
            z = jnp.dot(gap, wc_ref[...], preferred_element_type=jnp.float32)
            z = jnp.maximum(z * sc_ref[...] + bc_ref[...], 0.0)        # (1, R)
            # per-path 1x1 projections + softmax across paths
            logits = [jnp.dot(z, wp_ref[p], preferred_element_type=jnp.float32)
                      + bp_ref[p] for p in range(paths)]               # (1, C)
            m = logits[0]
            for p in range(1, paths):
                m = jnp.maximum(m, logits[p])
            exps = [jnp.exp(l - m) for l in logits]
            den = exps[0]
            for p in range(1, paths):
                den = den + exps[p]
            inv_den = pl.reciprocal(den, approx=True)
            att_ref[...] = jnp.concatenate([e * inv_den for e in exps], axis=0)
    return kernel


def sk_attention_weights(feats, wc, sc, bc, wp, bp, *, t_hw):
    """feats:(N,P,HW,C) bf16 -> attention weights (N,P,C) f32."""
    n, p_, hw, c = feats.shape
    r = wc.shape[1]
    kernel = _make_attention_kernel(p_, 1.0 / float(hw))
    return pl.pallas_call(
        kernel,
        out_shape=jax.ShapeDtypeStruct((n, p_, c), jnp.float32),
        grid_spec=pltpu.PrefetchScalarGridSpec(
            num_scalar_prefetch=0,
            grid=(n, hw // t_hw),
            in_specs=[
                pl.BlockSpec((None, p_, t_hw, c), lambda i, j: (i, 0, j, 0)),
                pl.BlockSpec((c, r), lambda i, j: (0, 0)),
                pl.BlockSpec((1, r), lambda i, j: (0, 0)),
                pl.BlockSpec((1, r), lambda i, j: (0, 0)),
                pl.BlockSpec((p_, r, c), lambda i, j: (0, 0, 0)),
                pl.BlockSpec((p_, 1, c), lambda i, j: (0, 0, 0)),
            ],
            out_specs=pl.BlockSpec((None, p_, c), lambda i, j: (i, 0, 0)),
            scratch_shapes=[pltpu.VMEM((1, c), jnp.float32)],
        ),
        compiler_params=pltpu.CompilerParams(
            dimension_semantics=("parallel", "arbitrary")),
    )(feats, wc, sc, bc, wp, bp)


# ---------------------------------------------------------------------------
# Kernel 2b: HW-tiled attention-weighted path sum.  Accumulates in a local
# value and stores the output tile exactly once (no o_ref read-modify-write).
# ---------------------------------------------------------------------------
def _make_weighted_sum_kernel(paths):
    def kernel(f_ref, att_ref, o_ref):
        # f_ref: (P, t_hw, C) bf16   att_ref: (P, C) f32   o_ref: (t_hw, C)
        att = att_ref[...]
        acc = f_ref[0].astype(jnp.float32) * att[0:1, :]
        for p in range(1, paths):
            acc = acc + f_ref[p].astype(jnp.float32) * att[p:p + 1, :]
        o_ref[...] = acc.astype(o_ref.dtype)
    return kernel


def sk_weighted_sum(feats, att, *, t_hw):
    """feats:(N,P,HW,C) bf16, att:(N,P,C) f32 -> (N,HW,C) f32."""
    n, p_, hw, c = feats.shape
    kernel = _make_weighted_sum_kernel(p_)
    return pl.pallas_call(
        kernel,
        out_shape=jax.ShapeDtypeStruct((n, hw, c), jnp.float32),
        grid_spec=pltpu.PrefetchScalarGridSpec(
            num_scalar_prefetch=0,
            grid=(n, hw // t_hw),
            in_specs=[
                pl.BlockSpec((None, p_, t_hw, c), lambda i, j: (i, 0, j, 0)),
                pl.BlockSpec((None, p_, c), lambda i, j: (i, 0, 0)),
            ],
            out_specs=pl.BlockSpec((None, t_hw, c), lambda i, j: (i, j, 0)),
        ),
        compiler_params=pltpu.CompilerParams(
            dimension_semantics=("parallel", "parallel")),
    )(feats, att)


# ---------------------------------------------------------------------------
# Wrapper: one SK path = dilated 3x3 grouped conv + folded BN + ReLU.
# im2col is built wrapper-side (metadata-ish jnp slicing) and emitted in bf16.
# ---------------------------------------------------------------------------
def conv3x3_bn_relu(x_nhwc, w_oihw, conv_b, bn, *, dilation, groups):
    """Returns (N, H*W, Cout) bf16 path features."""
    n, h, w_, cin = x_nhwc.shape
    cout = w_oihw.shape[0]
    d = dilation
    cin_g, cout_g = cin // groups, cout // groups
    gamma, beta, mean, var = bn
    scale = gamma / jnp.sqrt(var + _BN_EPS)
    bias = beta + scale * (conv_b - mean)       # fold conv bias + BN into bias

    xp = jnp.pad(x_nhwc, ((0, 0), (d, d), (d, d), (0, 0)))
    taps = [xp[:, kh * d:kh * d + h, kw * d:kw * d + w_, :]
            for kh in range(3) for kw in range(3)]
    col = jnp.stack(taps, axis=3)                            # (N,H,W,9,Cin)
    col = col.reshape(n, h, w_, 9, groups, cin_g)
    col = jnp.transpose(col, (4, 0, 1, 2, 3, 5))             # (G,N,H,W,9,cin_g)
    col = col.reshape(groups, n * h * w_, 9 * cin_g).astype(jnp.bfloat16)

    wg = w_oihw.reshape(groups, cout_g, cin_g, 3, 3)
    wg = jnp.transpose(wg, (0, 3, 4, 2, 1))                  # (G,3,3,cin_g,cout_g)
    wg = wg.reshape(groups, 9 * cin_g, cout_g).astype(jnp.bfloat16)

    sg = scale.reshape(groups, 1, cout_g)
    bg = bias.reshape(groups, 1, cout_g)

    out = grouped_matmul_bn_relu(col, wg, sg, bg)            # (G, M, cout_g) bf16
    out = out.reshape(groups, n, h * w_, cout_g)
    out = jnp.transpose(out, (1, 2, 0, 3)).reshape(n, h * w_, cout)
    return out


def selective_conv_forward(x_nchw, params, *, paths, groups):
    n, cin, h, w_ = x_nchw.shape
    cout = params["conv_w"][0].shape[0]
    x_nhwc = jnp.transpose(x_nchw, (0, 2, 3, 1))

    path_feats = [
        conv3x3_bn_relu(x_nhwc, params["conv_w"][p], params["conv_b"][p],
                        params["bn2"][p], dilation=1 + p, groups=groups)
        for p in range(paths)
    ]
    feats = jnp.stack(path_feats, axis=1)                    # (N, P, HW, Cout) bf16

    # Fold Linear bias + BatchNorm1d into (scale, bias) for the compress stage.
    g1, b1, m1, v1 = params["bn1"]
    sc = g1 / jnp.sqrt(v1 + _BN_EPS)
    bc = b1 + sc * (params["lin_b"] - m1)
    wc = params["lin_w"].T                                   # (Cout, R)
    rdim = wc.shape[1]
    wp = jnp.stack([params["proj_w"][p].reshape(cout, rdim).T
                    for p in range(paths)], axis=0)          # (P, R, Cout)
    bp = jnp.stack([params["proj_b"][p] for p in range(paths)],
                   axis=0)[:, None, :]                       # (P, 1, Cout)

    t_hw = _pick_hw_tile(h * w_)
    att = sk_attention_weights(feats, wc, sc[None, :], bc[None, :], wp, bp,
                               t_hw=t_hw)                    # (N, P, Cout) f32
    fused = sk_weighted_sum(feats, att, t_hw=t_hw)           # (N, HW, Cout) f32
    # Metadata-only reshape back to NCHW.
    return jnp.transpose(fused, (0, 2, 1)).reshape(n, cout, h, w_)


# ---------------------------------------------------------------------------
# Pure-JAX reference (inference-mode BN, f32 HIGHEST), for validation.
# ---------------------------------------------------------------------------
def reference_forward(x, params, *, paths, groups):
    feats = []
    for p in range(paths):
        d = 1 + p
        y = lax.conv_general_dilated(
            x, params["conv_w"][p], window_strides=(1, 1),
            padding=((d, d), (d, d)), rhs_dilation=(d, d),
            dimension_numbers=("NCHW", "OIHW", "NCHW"),
            feature_group_count=groups, precision=lax.Precision.HIGHEST)
        y = y + params["conv_b"][p][None, :, None, None]
        g, b, m, v = params["bn2"][p]
        y = (y - m[None, :, None, None]) / jnp.sqrt(v[None, :, None, None] + _BN_EPS)
        y = y * g[None, :, None, None] + b[None, :, None, None]
        feats.append(jnp.maximum(y, 0.0))
    features = jnp.stack(feats, axis=1)                      # (N, P, C, H, W)
    fused = features.sum(axis=1)
    gap = fused.mean(axis=(2, 3))                            # (N, C)
    z = gap @ params["lin_w"].T + params["lin_b"]
    g, b, m, v = params["bn1"]
    z = jnp.maximum((z - m) / jnp.sqrt(v + _BN_EPS) * g + b, 0.0)
    c = features.shape[2]
    r = params["lin_w"].shape[0]
    logits = []
    for p in range(paths):
        wpj = params["proj_w"][p].reshape(c, r)
        logits.append(z @ wpj.T + params["proj_b"][p])
    att = jax.nn.softmax(jnp.stack(logits, axis=1), axis=1)  # (N, P, C)
    return (features * att[:, :, :, None, None]).sum(axis=1)


if __name__ == "__main__":
    N, CIN, H, W = 2, 8, 16, 16
    COUT, GROUPS, PATHS, RATIO = 128, 1, 2, 16
    RDIM = max(COUT // RATIO, 32)

    keys = iter(jax.random.split(jax.random.PRNGKey(0), 32))

    def nrm(shape, std=1.0):
        return jax.random.normal(next(keys), shape, dtype=jnp.float32) * std

    def uni(shape, lo, hi):
        return jax.random.uniform(next(keys), shape, dtype=jnp.float32,
                                  minval=lo, maxval=hi)

    params = {
        "conv_w": [nrm((COUT, CIN // GROUPS, 3, 3), 0.15) for _ in range(PATHS)],
        "conv_b": [nrm((COUT,), 0.1) for _ in range(PATHS)],
        "bn2": [(uni((COUT,), 0.5, 1.5), nrm((COUT,), 0.1),
                 nrm((COUT,), 0.1), uni((COUT,), 0.5, 1.5)) for _ in range(PATHS)],
        "lin_w": nrm((RDIM, COUT), 0.1),
        "lin_b": nrm((RDIM,), 0.1),
        "bn1": (uni((RDIM,), 0.5, 1.5), nrm((RDIM,), 0.1),
                nrm((RDIM,), 0.1), uni((RDIM,), 0.5, 1.5)),
        "proj_w": [nrm((COUT, RDIM, 1, 1), 0.2) for _ in range(PATHS)],
        "proj_b": [nrm((COUT,), 0.1) for _ in range(PATHS)],
    }

    x = nrm((N, CIN, H, W), 1.0)

    out = selective_conv_forward(x, params, paths=PATHS, groups=GROUPS)
    jax.block_until_ready(out)

    ref = reference_forward(x, params, paths=PATHS, groups=GROUPS)
    assert out.shape == (N, COUT, H, W), out.shape
    max_err = jnp.max(jnp.abs(out - ref))
    assert jnp.allclose(out, ref, atol=2e-2, rtol=2e-2), f"max abs err {max_err}"

    print("KERNEL_OK")
</pallas_src>

<mosaic_0001>
module attributes {stable_mosaic.version = 11 : i64} {
  func.func @_conv_mm_kernel(%arg0: i32, %arg1: i32, %arg2: i32, %arg3: memref<1x512x72xbf16, #tpu.memory_space<vmem>>, %arg4: memref<1x72x128xbf16, #tpu.memory_space<vmem>>, %arg5: memref<1x1x128xf32, #tpu.memory_space<vmem>>, %arg6: memref<1x1x128xf32, #tpu.memory_space<vmem>>, %arg7: memref<1x512x128xbf16, #tpu.memory_space<vmem>>) attributes {dimension_semantics = [#tpu.dimension_semantics<parallel>, #tpu.dimension_semantics<parallel>, #tpu.dimension_semantics<parallel>], iteration_bounds = array<i64: 1, 1, 1>, scalar_prefetch = 0 : i64, scratch_operands = 0 : i64, tpu.core_type = #tpu.core_type<tc>, window_params = [{transform_indices = @transform_0, window_bounds = array<i64: 1, 512, 72>}, {transform_indices = @transform_1, window_bounds = array<i64: 1, 72, 128>}, {transform_indices = @transform_2, window_bounds = array<i64: 1, 1, 128>}, {transform_indices = @transform_3, window_bounds = array<i64: 1, 1, 128>}, {transform_indices = @transform_4, window_bounds = array<i64: 1, 512, 128>}]} {
    %c0 = arith.constant 0 : index
    %c0_0 = arith.constant 0 : index
    %c0_1 = arith.constant 0 : index
    %0 = vector.load %arg3[%c0, %c0_0, %c0_1] : memref<1x512x72xbf16, #tpu.memory_space<vmem>>, vector<1x512x72xbf16>
    %1 = vector.shape_cast %0 : vector<1x512x72xbf16> to vector<512x72xbf16>
    %c0_2 = arith.constant 0 : index
    %c0_3 = arith.constant 0 : index
    %c0_4 = arith.constant 0 : index
    %2 = vector.load %arg4[%c0_2, %c0_3, %c0_4] : memref<1x72x128xbf16, #tpu.memory_space<vmem>>, vector<1x72x128xbf16>
    %3 = vector.shape_cast %2 : vector<1x72x128xbf16> to vector<72x128xbf16>
    %cst = arith.constant dense<0.000000e+00> : vector<512x128xf32>
    %4 = tpu.matmul %1, %3, %cst {dimension_numbers = #tpu.dot_dimension_numbers<[1], [0], [0], [1], [0, 0, 1, 1], [], []>} : vector<512x72xbf16>, vector<72x128xbf16>, vector<512x128xf32> -> vector<512x128xf32>
    %c0_5 = arith.constant 0 : index
    %c0_6 = arith.constant 0 : index
    %c0_7 = arith.constant 0 : index
    %5 = vector.load %arg5[%c0_5, %c0_6, %c0_7] : memref<1x1x128xf32, #tpu.memory_space<vmem>>, vector<1x1x128xf32>
    %6 = vector.shape_cast %5 : vector<1x1x128xf32> to vector<1x128xf32>
    %7 = vector.broadcast %6 : vector<1x128xf32> to vector<512x128xf32>
    %8 = arith.mulf %4, %7 : vector<512x128xf32>
    %c0_8 = arith.constant 0 : index
    %c0_9 = arith.constant 0 : index
    %c0_10 = arith.constant 0 : index
    %9 = vector.load %arg6[%c0_8, %c0_9, %c0_10] : memref<1x1x128xf32, #tpu.memory_space<vmem>>, vector<1x1x128xf32>
    %10 = vector.shape_cast %9 : vector<1x1x128xf32> to vector<1x128xf32>
    %11 = vector.broadcast %10 : vector<1x128xf32> to vector<512x128xf32>
    %12 = arith.addf %8, %11 : vector<512x128xf32>
    %cst_11 = arith.constant 0.000000e+00 : f32
    %13 = vector.broadcast %cst_11 : f32 to vector<512x128xf32>
    %14 = arith.maximumf %12, %13 : vector<512x128xf32>
    %15 = arith.truncf %14 : vector<512x128xf32> to vector<512x128xbf16>
    %c0_12 = arith.constant 0 : index
    %c0_13 = arith.constant 0 : index
    %c0_14 = arith.constant 0 : index
    %16 = vector.load %arg7[%c0_12, %c0_13, %c0_14] : memref<1x512x128xbf16, #tpu.memory_space<vmem>>, vector<1x512x128xbf16>
    %17 = vector.shape_cast %16 : vector<1x512x128xbf16> to vector<512x128xbf16>
    %18 = vector.shape_cast %15 : vector<512x128xbf16> to vector<1x512x128xbf16>
    tpu.vector_store %arg7[%c0_12, %c0_13, %c0_14], %18 {strides = array<i32>} : memref<1x512x128xbf16, #tpu.memory_space<vmem>>, vector<1x512x128xbf16>,
    return
  }
  func.func @transform_0(%arg0: i32, %arg1: i32, %arg2: i32) -> (i32, i32, i32) {
    %c0_i32 = arith.constant 0 : i32
    %c0_i32_0 = arith.constant 0 : i32
    return %arg0, %arg1, %c0_i32 : i32, i32, i32
  }
  func.func @transform_1(%arg0: i32, %arg1: i32, %arg2: i32) -> (i32, i32, i32) {
    %c0_i32 = arith.constant 0 : i32
    %c0_i32_0 = arith.constant 0 : i32
    return %arg0, %c0_i32, %arg2 : i32, i32, i32
  }
  func.func @transform_2(%arg0: i32, %arg1: i32, %arg2: i32) -> (i32, i32, i32) {
    %c0_i32 = arith.constant 0 : i32
    %c0_i32_0 = arith.constant 0 : i32
    return %arg0, %c0_i32, %arg2 : i32, i32, i32
  }
  func.func @transform_3(%arg0: i32, %arg1: i32, %arg2: i32) -> (i32, i32, i32) {
    %c0_i32 = arith.constant 0 : i32
    %c0_i32_0 = arith.constant 0 : i32
    return %arg0, %c0_i32, %arg2 : i32, i32, i32
  }
  func.func @transform_4(%arg0: i32, %arg1: i32, %arg2: i32) -> (i32, i32, i32) {
    %c0_i32 = arith.constant 0 : i32
    return %arg0, %arg1, %arg2 : i32, i32, i32
  }
}

</mosaic_0001>

<llo_original>
// kernel: tpu_custom_call.1
$region0: #{tpu_custom_call.1}
  #allocation0 [shape = 'u32[]', space=smem, size = 0x4, offset = 0x4, fixed_abs, tag = 'smem constant byte address 0x4 - core index']
  #allocation1 [shape = 'u32[144,128]{1,0:T(1,128)}', space=vmem, size = 0x12000, scoped, tag = 'internal scratch']
  %s0 = inlined_call_operand.vmem [shape: bf16[1,512,72], index: 0, kind: input, shape index: {}]
  %s1 = inlined_call_operand.vmem [shape: bf16[1,72,128], index: 1, kind: input, shape index: {}]
  %s2 = inlined_call_operand.vmem [shape: f32[1,1,128], index: 2, kind: input, shape index: {}]
  %s3 = inlined_call_operand.vmem [shape: f32[1,1,128], index: 3, kind: input, shape index: {}]
  %s4 = inlined_call_operand.hbm [shape: bf16[1,512,128], index: 4, kind: output, shape index: {}]
  %s5 = sld [smem:[#allocation0]]
  $region26: #{tpu_custom_call.1} parent=0
    _
  %s7 = ssub.s32 1, %s5
  %s8 = scalar_select 0, %s7, %s5
  $region1: #{tpu_custom_call.1} parent=0
    #allocation2 [shape = 'u8[131072]{0}', space=vmem, size = 0x20000, scoped, tag = 'output window, operand 0, single buffered']
    #allocation3 [shape = 's32[1]{0}', space=sflag, size = 0x4, scoped, tag = 'scoped memory for tpu_custom_call.1']
    %9 = vsyncpa [#allocation3], 0
    // Predicated region
    $region2: #{tpu_custom_call.1} parent=1 // pred_check
      _
    $region3: #{tpu_custom_call.1} parent=1 // pred_check_branch
      %11 = sbr.rel (0) target = $region5
    $region4: #{tpu_custom_call.1} parent=1 // pred_region
      _
    $region5: #{tpu_custom_call.1} parent=1 // pred_fallthru
      _
    // Predicated region
    $region6: #{tpu_custom_call.1} parent=1 // pred_check
      _
    $region7: #{tpu_custom_call.1} parent=1 // pred_check_branch
      %13 = sbr.rel (0) target = $region9
    $region8: #{tpu_custom_call.1} parent=1 // pred_region
      _
    $region9: #{tpu_custom_call.1} parent=1 // pred_fallthru
      _
    // Predicated region
    $region10: #{tpu_custom_call.1} parent=1 // pred_check
      _
    $region11: #{tpu_custom_call.1} parent=1 // pred_check_branch
      %15 = sbr.rel (0) target = $region13
    $region12: #{tpu_custom_call.1} parent=1 // pred_region
      _
    $region13: #{tpu_custom_call.1} parent=1 // pred_fallthru
      _
    // Predicated region
    $region14: #{tpu_custom_call.1} parent=1 // pred_check
      _
    $region15: #{tpu_custom_call.1} parent=1 // pred_check_branch
      %17 = sbr.rel (0) target = $region17
    $region16: #{tpu_custom_call.1} parent=1 // pred_region
      _
    $region17: #{tpu_custom_call.1} parent=1 // pred_fallthru
      _
    %v19 = vld [vmem:[%s0] sm:$0xf]
    %v20 = vld [vmem:[%s0 + $0x4] sm:$0xf]
    %v21 = vld [vmem:[%s0 + $0x8] sm:$0xf]
    %v22 = vld [vmem:[%s0 + $0xc] sm:$0xf]
    %v23 = vld [vmem:[%s0 + $0x10] sm:$0xf]
    %v24 = vld [vmem:[%s0 + $0x14] sm:$0xf]
    %v25 = vld [vmem:[%s0 + $0x18] sm:$0xf]
    %v26 = vld [vmem:[%s0 + $0x1c] sm:$0xf]
    %v27 = vld [vmem:[%s0 + $0x20] sm:$0xf]
    %v28 = vld [vmem:[%s0 + $0x24] sm:$0xf]
    %v29 = vld [vmem:[%s0 + $0x28] sm:$0xf]
    %v30 = vld [vmem:[%s0 + $0x2c] sm:$0xf]
    %v31 = vld [vmem:[%s0 + $0x30] sm:$0xf]
    %v32 = vld [vmem:[%s0 + $0x34] sm:$0xf]
    %v33 = vld [vmem:[%s0 + $0x38] sm:$0xf]
    %v34 = vld [vmem:[%s0 + $0x3c] sm:$0xf]
    %v35 = vld [vmem:[%s0 + $0x40] sm:$0xf]
    %v36 = vld [vmem:[%s0 + $0x44] sm:$0xf]
    %v37 = vld [vmem:[%s0 + $0x48] sm:$0xf]
    %v38 = vld [vmem:[%s0 + $0x4c] sm:$0xf]
    %v39 = vld [vmem:[%s0 + $0x50] sm:$0xf]
    %v40 = vld [vmem:[%s0 + $0x54] sm:$0xf]
    %v41 = vld [vmem:[%s0 + $0x58] sm:$0xf]
    %v42 = vld [vmem:[%s0 + $0x5c] sm:$0xf]
    %v43 = vld [vmem:[%s0 + $0x60] sm:$0xf]
    %v44 = vld [vmem:[%s0 + $0x64] sm:$0xf]
    %v45 = vld [vmem:[%s0 + $0x68] sm:$0xf]
    %v46 = vld [vmem:[%s0 + $0x6c] sm:$0xf]
    %v47 = vld [vmem:[%s0 + $0x70] sm:$0xf]
    %v48 = vld [vmem:[%s0 + $0x74] sm:$0xf]
    %v49 = vld [vmem:[%s0 + $0x78] sm:$0xf]
    %v50 = vld [vmem:[%s0 + $0x7c] sm:$0xf]
    %v51 = vld [vmem:[%s0 + $0x80] sm:$0xf]
    %v52 = vld [vmem:[%s0 + $0x84] sm:$0xf]
    %v53 = vld [vmem:[%s0 + $0x88] sm:$0xf]
    %v54 = vld [vmem:[%s0 + $0x8c] sm:$0xf]
    %v55 = vld [vmem:[%s0 + $0x90] sm:$0xf]
    %v56 = vld [vmem:[%s0 + $0x94] sm:$0xf]
    %v57 = vld [vmem:[%s0 + $0x98] sm:$0xf]
    %v58 = vld [vmem:[%s0 + $0x9c] sm:$0xf]
    %v59 = vld [vmem:[%s0 + $0xa0] sm:$0xf]
    %v60 = vld [vmem:[%s0 + $0xa4] sm:$0xf]
    %v61 = vld [vmem:[%s0 + $0xa8] sm:$0xf]
    %v62 = vld [vmem:[%s0 + $0xac] sm:$0xf]
    %v63 = vld [vmem:[%s0 + $0xb0] sm:$0xf]
    %v64 = vld [vmem:[%s0 + $0xb4] sm:$0xf]
    %v65 = vld [vmem:[%s0 + $0xb8] sm:$0xf]
    %v66 = vld [vmem:[%s0 + $0xbc] sm:$0xf]
    %v67 = vld [vmem:[%s0 + $0xc0] sm:$0xf]
    %v68 = vld [vmem:[%s0 + $0xc4] sm:$0xf]
    %v69 = vld [vmem:[%s0 + $0xc8] sm:$0xf]
    %v70 = vld [vmem:[%s0 + $0xcc] sm:$0xf]
    %v71 = vld [vmem:[%s0 + $0xd0] sm:$0xf]
    %v72 = vld [vmem:[%s0 + $0xd4] sm:$0xf]
    %v73 = vld [vmem:[%s0 + $0xd8] sm:$0xf]
    %v74 = vld [vmem:[%s0 + $0xdc] sm:$0xf]
    %v75 = vld [vmem:[%s0 + $0xe0] sm:$0xf]
    %v76 = vld [vmem:[%s0 + $0xe4] sm:$0xf]
    %v77 = vld [vmem:[%s0 + $0xe8] sm:$0xf]
    %v78 = vld [vmem:[%s0 + $0xec] sm:$0xf]
    %v79 = vld [vmem:[%s0 + $0xf0] sm:$0xf]
    %v80 = vld [vmem:[%s0 + $0xf4] sm:$0xf]
    %v81 = vld [vmem:[%s0 + $0xf8] sm:$0xf]
    %v82 = vld [vmem:[%s0 + $0xfc] sm:$0xf]
    %v83 = vld [vmem:[%s1] sm:$0xf]
    %v84 = vld [vmem:[%s1 + $0x4] sm:$0xf]
    %v85 = vld [vmem:[%s1 + $0x8] sm:$0xf]
    %v86 = vld [vmem:[%s1 + $0xc] sm:$0xf]
    %v87 = vld [vmem:[%s1 + $0x10] sm:$0xf]
    %v88 = vld [vmem:[%s1 + $0x14] sm:$0xf]
    %v89 = vld [vmem:[%s1 + $0x18] sm:$0xf]
    %v90 = vld [vmem:[%s1 + $0x1c] sm:$0xf]
    %v91 = vld [vmem:[%s1 + $0x20] sm:$0xf]
    %v156 = vunpack.c.l.b16 %v19
    %v157 = vunpack.c.l.b16 %v20
    %v158 = vunpack.c.l.b16 %v21
    %v159 = vunpack.c.l.b16 %v22
    %v160 = vunpack.c.l.b16 %v23
    %v161 = vunpack.c.l.b16 %v24
    %v162 = vunpack.c.l.b16 %v25
    %v163 = vunpack.c.l.b16 %v26
    %v164 = vunpack.c.l.b16 %v27
    %v165 = vunpack.c.l.b16 %v28
    %v166 = vunpack.c.l.b16 %v29
    %v167 = vunpack.c.l.b16 %v30
    %v168 = vunpack.c.l.b16 %v31
    %v169 = vunpack.c.l.b16 %v32
    %v170 = vunpack.c.l.b16 %v33
    %v171 = vunpack.c.l.b16 %v34
    %v172 = vunpack.c.l.b16 %v35
    %v173 = vunpack.c.l.b16 %v36
    %v174 = vunpack.c.l.b16 %v37
    %v175 = vunpack.c.l.b16 %v38
    %v176 = vunpack.c.l.b16 %v39
    %v177 = vunpack.c.l.b16 %v40
    %v178 = vunpack.c.l.b16 %v41
    %v179 = vunpack.c.l.b16 %v42
    %v180 = vunpack.c.l.b16 %v43
    %v181 = vunpack.c.l.b16 %v44
    %v182 = vunpack.c.l.b16 %v45
    %v183 = vunpack.c.l.b16 %v46
    %v184 = vunpack.c.l.b16 %v47
    %v185 = vunpack.c.l.b16 %v48
    %v186 = vunpack.c.l.b16 %v49
    %v187 = vunpack.c.l.b16 %v50
    %v188 = vunpack.c.l.b16 %v51
    %v189 = vunpack.c.l.b16 %v52
    %v190 = vunpack.c.l.b16 %v53
    %v191 = vunpack.c.l.b16 %v54
    %v192 = vunpack.c.l.b16 %v55
    %v193 = vunpack.c.l.b16 %v56
    %v194 = vunpack.c.l.b16 %v57
    %v195 = vunpack.c.l.b16 %v58
    %v196 = vunpack.c.l.b16 %v59
    %v197 = vunpack.c.l.b16 %v60
    %v198 = vunpack.c.l.b16 %v61
    %v199 = vunpack.c.l.b16 %v62
    %v200 = vunpack.c.l.b16 %v63
    %v201 = vunpack.c.l.b16 %v64
    %v202 = vunpack.c.l.b16 %v65
    %v203 = vunpack.c.l.b16 %v66
    %v204 = vunpack.c.l.b16 %v67
    %v205 = vunpack.c.l.b16 %v68
    %v206 = vunpack.c.l.b16 %v69
    %v207 = vunpack.c.l.b16 %v70
    %v208 = vunpack.c.l.b16 %v71
    %v209 = vunpack.c.l.b16 %v72
    %v210 = vunpack.c.l.b16 %v73
    %v211 = vunpack.c.l.b16 %v74
    %v212 = vunpack.c.l.b16 %v75
    %v213 = vunpack.c.l.b16 %v76
    %v214 = vunpack.c.l.b16 %v77
    %v215 = vunpack.c.l.b16 %v78
    %v216 = vunpack.c.l.b16 %v79
    %v217 = vunpack.c.l.b16 %v80
    %v218 = vunpack.c.l.b16 %v81
    %v219 = vunpack.c.l.b16 %v82
    %v220 = vpack.c.b16 %v157, %v156
    %v221 = vpack.c.b16 %v159, %v158
    %v222 = vpack.c.b16 %v161, %v160
    %v223 = vpack.c.b16 %v163, %v162
    %v224 = vpack.c.b16 %v165, %v164
    %v225 = vpack.c.b16 %v167, %v166
    %v226 = vpack.c.b16 %v169, %v168
    %v227 = vpack.c.b16 %v171, %v170
    %v228 = vpack.c.b16 %v173, %v172
    %v229 = vpack.c.b16 %v175, %v174
    %v230 = vpack.c.b16 %v177, %v176
    %v231 = vpack.c.b16 %v179, %v178
    %v232 = vpack.c.b16 %v181, %v180
    %v233 = vpack.c.b16 %v183, %v182
    %v234 = vpack.c.b16 %v185, %v184
    %v235 = vpack.c.b16 %v187, %v186
    %v236 = vpack.c.b16 %v189, %v188
    %v237 = vpack.c.b16 %v191, %v190
    %v238 = vpack.c.b16 %v193, %v192
    %v239 = vpack.c.b16 %v195, %v194
    %v240 = vpack.c.b16 %v197, %v196
    %v241 = vpack.c.b16 %v199, %v198
    %v242 = vpack.c.b16 %v201, %v200
    %v243 = vpack.c.b16 %v203, %v202
    %v244 = vpack.c.b16 %v205, %v204
    %v245 = vpack.c.b16 %v207, %v206
    %v246 = vpack.c.b16 %v209, %v208
    %v247 = vpack.c.b16 %v211, %v210
    %v248 = vpack.c.b16 %v213, %v212
    %v249 = vpack.c.b16 %v215, %v214
    %v250 = vpack.c.b16 %v217, %v216
    %v251 = vpack.c.b16 %v219, %v218
    %v261 = vunpack.c.l.b16 %v83
    %v262 = vunpack.c.l.b16 %v84
    %v263 = vunpack.c.l.b16 %v85
    %v264 = vunpack.c.l.b16 %v86
    %v265 = vunpack.c.l.b16 %v87
    %v266 = vunpack.c.l.b16 %v88
    %v267 = vunpack.c.l.b16 %v89
    %v268 = vunpack.c.l.b16 %v90
    %v269 = vunpack.c.l.b16 %v91
    %v270 = vpack.c.b16 %v262, %v261
    %v271 = vpack.c.b16 %v264, %v263
    %v272 = vpack.c.b16 %v266, %v265
    %v273 = vpack.c.b16 %v268, %v267
    %v274 = vpack.c.b16 %v269, %v269
    %vm279 = vcmask 588800
    %v281 = vsel %vm279, %v220, 0
    %v284 = vsel %vm279, %v221, 0
    %v287 = vsel %vm279, %v222, 0
    %v290 = vsel %vm279, %v223, 0
    %v293 = vsel %vm279, %v224, 0
    %v296 = vsel %vm279, %v225, 0
    %v299 = vsel %vm279, %v226, 0
    %v302 = vsel %vm279, %v227, 0
    %v305 = vsel %vm279, %v228, 0
    %v308 = vsel %vm279, %v229, 0
    %v311 = vsel %vm279, %v230, 0
    %v314 = vsel %vm279, %v231, 0
    %v317 = vsel %vm279, %v232, 0
    %v320 = vsel %vm279, %v233, 0
    %v323 = vsel %vm279, %v234, 0
    %v326 = vsel %vm279, %v235, 0
    %v329 = vsel %vm279, %v236, 0
    %v332 = vsel %vm279, %v237, 0
    %v335 = vsel %vm279, %v238, 0
    %v338 = vsel %vm279, %v239, 0
    %v341 = vsel %vm279, %v240, 0
    %v344 = vsel %vm279, %v241, 0
    %v347 = vsel %vm279, %v242, 0
    %v350 = vsel %vm279, %v243, 0
    %v353 = vsel %vm279, %v244, 0
    %v356 = vsel %vm279, %v245, 0
    %v359 = vsel %vm279, %v246, 0
    %v362 = vsel %vm279, %v247, 0
    %v365 = vsel %vm279, %v248, 0
    %v368 = vsel %vm279, %v249, 0
    %v371 = vsel %vm279, %v250, 0
    %v374 = vsel %vm279, %v251, 0
    %vm376 = vcmask 1043456
    %v378 = vsel %vm376, %v274, 0
    %380 = vmatprep.subr.bf16.mxu0 0
    %381 = vmatpush1.bf16.msra.mxu0 %v270
    %382 = vmatprep.subr.bf16.mxu0 0
    %383 = vmatpush1.bf16.msra.mxu0 %v271
    %384 = vmatprep.subr.bf16.mxu0 0
    %385 = vmatpush1.bf16.msra.mxu0 %v272
    %386 = vmatprep.subr.bf16.mxu0 0
    %387 = vmatpush1.bf16.msra.mxu0 %v273
    %388 = vmatprep.subr.bf16.mxu0 0
    %389 = vmatpush1.bf16.msra.mxu0 %v378
    %390 = vmatprep.subr.bf16.mxu0 0
    %391 = vmatpush1.bf16.msra.mxu0 0
    %392 = vmatprep.subr.bf16.mxu0 0
    %393 = vmatpush1.bf16.msra.mxu0 0
    %394 = vmatprep.subr.bf16.mxu0 0
    %395 = vmatpush1.bf16.msra.mxu0 0
    %396 = vmatprep.subr.bf16.mxu0 0
    %397 = vmatpush1.bf16.msra.mxu0 0
    %398 = vmatprep.subr.bf16.mxu0 0
    %399 = vmatpush1.bf16.msra.mxu0 0
    %400 = vmatprep.subr.bf16.mxu0 0
    %401 = vmatpush1.bf16.msra.mxu0 0
    %402 = vmatprep.subr.bf16.mxu0 0
    %403 = vmatpush1.bf16.msra.mxu0 0
    %404 = vmatprep.subr.bf16.mxu0 0
    %405 = vmatpush1.bf16.msra.mxu0 0
    %406 = vmatprep.subr.bf16.mxu0 0
    %407 = vmatpush1.bf16.msra.mxu0 0
    %408 = vmatprep.subr.bf16.mxu0 0
    %409 = vmatpush1.bf16.msra.mxu0 0
    %410 = vmatprep.subr.bf16.mxu0 0
    %411 = vmatpush1.bf16.msra.mxu0 0
    %412 = vmatprep.mubr.bf16.mxu0 0
    %413 = vmatmul.mubr.bf16.gmra.mrb[0].mxu0 %v281
    %v414 = vpop.f32.mrb[0].mxu0
    %v415 = vadd.f32 0.0, %v414
    %v416 = vpop.f32.mrb[0].mxu0
    %v417 = vpop.f32.mrb[0].mxu0
    %v418 = vadd.f32 0.0, %v417
    %v419 = vpop.f32.mrb[0].mxu0
    %420 = vmatprep.mubr.bf16.mxu0 0
    %421 = vmatmul.mubr.bf16.gmra.mrb[0].mxu0 %v284
    %v422 = vpop.f32.mrb[0].mxu0
    %v423 = vadd.f32 0.0, %v422
    %v424 = vpop.f32.mrb[0].mxu0
    %v425 = vpop.f32.mrb[0].mxu0
    %v426 = vadd.f32 0.0, %v425
    %v427 = vpop.f32.mrb[0].mxu0
    %428 = vmatprep.mubr.bf16.mxu0 0
    %429 = vmatmul.mubr.bf16.gmra.mrb[0].mxu0 %v287
    %v430 = vpop.f32.mrb[0].mxu0
    %v431 = vadd.f32 0.0, %v430
    %v432 = vpop.f32.mrb[0].mxu0
    %v433 = vpop.f32.mrb[0].mxu0
    %v434 = vadd.f32 0.0, %v433
    %v435 = vpop.f32.mrb[0].mxu0
    %436 = vmatprep.mubr.bf16.mxu0 0
    %437 = vmatmul.mubr.bf16.gmra.mrb[0].mxu0 %v290
    %v438 = vpop.f32.mrb[0].mxu0
    %v439 = vadd.f32 0.0, %v438
    %v440 = vpop.f32.mrb[0].mxu0
    %v441 = vpop.f32.mrb[0].mxu0
    %v442 = vadd.f32 0.0, %v441
    %v443 = vpop.f32.mrb[0].mxu0
    %444 = vmatprep.mubr.bf16.mxu0 0
    %445 = vmatmul.mubr.bf16.gmra.mrb[0].mxu0 %v293
    %v446 = vpop.f32.mrb[0].mxu0
    %v447 = vadd.f32 0.0, %v446
    %v448 = vpop.f32.mrb[0].mxu0
    %v449 = vpop.f32.mrb[0].mxu0
    %v450 = vadd.f32 0.0, %v449
    %v451 = vpop.f32.mrb[0].mxu0
    %452 = vmatprep.mubr.bf16.mxu0 0
    %453 = vmatmul.mubr.bf16.gmra.mrb[0].mxu0 %v296
    %v454 = vpop.f32.mrb[0].mxu0
    %v455 = vadd.f32 0.0, %v454
    %v456 = vpop.f32.mrb[0].mxu0
    %v457 = vpop.f32.mrb[0].mxu0
    %v458 = vadd.f32 0.0, %v457
    %v459 = vpop.f32.mrb[0].mxu0
    %460 = vmatprep.mubr.bf16.mxu0 0
    %461 = vmatmul.mubr.bf16.gmra.mrb[0].mxu0 %v299
    %v462 = vpop.f32.mrb[0].mxu0
    %v463 = vadd.f32 0.0, %v462
    %v464 = vpop.f32.mrb[0].mxu0
    %v465 = vpop.f32.mrb[0].mxu0
    %v466 = vadd.f32 0.0, %v465
    %v467 = vpop.f32.mrb[0].mxu0
    %468 = vmatprep.mubr.bf16.mxu0 0
    %469 = vmatmul.mubr.bf16.gmra.mrb[0].mxu0 %v302
    %v470 = vpop.f32.mrb[0].mxu0
    %v471 = vadd.f32 0.0, %v470
    %v472 = vpop.f32.mrb[0].mxu0
    %v473 = vpop.f32.mrb[0].mxu0
    %v474 = vadd.f32 0.0, %v473
    %v475 = vpop.f32.mrb[0].mxu0
    %476 = vmatprep.mubr.bf16.mxu0 0
    %477 = vmatmul.mubr.bf16.gmra.mrb[0].mxu0 %v305
    %v478 = vpop.f32.mrb[0].mxu0
    %v479 = vadd.f32 0.0, %v478
    %v480 = vpop.f32.mrb[0].mxu0
    %v481 = vpop.f32.mrb[0].mxu0
    %v482 = vadd.f32 0.0, %v481
    %v483 = vpop.f32.mrb[0].mxu0
    %484 = vmatprep.mubr.bf16.mxu0 0
    %485 = vmatmul.mubr.bf16.gmra.mrb[0].mxu0 %v308
    %v486 = vpop.f32.mrb[0].mxu0
    %v487 = vadd.f32 0.0, %v486
    %v488 = vpop.f32.mrb[0].mxu0
    %v489 = vpop.f32.mrb[0].mxu0
    %v490 = vadd.f32 0.0, %v489
    %v491 = vpop.f32.mrb[0].mxu0
    %492 = vmatprep.mubr.bf16.mxu0 0
    %493 = vmatmul.mubr.bf16.gmra.mrb[0].mxu0 %v311
    %v494 = vpop.f32.mrb[0].mxu0
    %v495 = vadd.f32 0.0, %v494
    %v496 = vpop.f32.mrb[0].mxu0
    %v497 = vpop.f32.mrb[0].mxu0
    %v498 = vadd.f32 0.0, %v497
    %v499 = vpop.f32.mrb[0].mxu0
    %500 = vmatprep.mubr.bf16.mxu0 0
    %501 = vmatmul.mubr.bf16.gmra.mrb[0].mxu0 %v314
    %v502 = vpop.f32.mrb[0].mxu0
    %v503 = vadd.f32 0.0, %v502
    %v504 = vpop.f32.mrb[0].mxu0
    %v505 = vpop.f32.mrb[0].mxu0
    %v506 = vadd.f32 0.0, %v505
    %v507 = vpop.f32.mrb[0].mxu0
    %508 = vmatprep.mubr.bf16.mxu0 0
    %509 = vmatmul.mubr.bf16.gmra.mrb[0].mxu0 %v317
    %v510 = vpop.f32.mrb[0].mxu0
    %v511 = vadd.f32 0.0, %v510
    %v512 = vpop.f32.mrb[0].mxu0
    %v513 = vpop.f32.mrb[0].mxu0
    %v514 = vadd.f32 0.0, %v513
    %v515 = vpop.f32.mrb[0].mxu0
    %516 = vmatprep.mubr.bf16.mxu0 0
    %517 = vmatmul.mubr.bf16.gmra.mrb[0].mxu0 %v320
    %v518 = vpop.f32.mrb[0].mxu0
    %v519 = vadd.f32 0.0, %v518
    %v520 = vpop.f32.mrb[0].mxu0
    %v521 = vpop.f32.mrb[0].mxu0
    %v522 = vadd.f32 0.0, %v521
    %v523 = vpop.f32.mrb[0].mxu0
    %524 = vmatprep.mubr.bf16.mxu0 0
    %525 = vmatmul.mubr.bf16.gmra.mrb[0].mxu0 %v323
    %v526 = vpop.f32.mrb[0].mxu0
    %v527 = vadd.f32 0.0, %v526
    %v528 = vpop.f32.mrb[0].mxu0
    %v529 = vpop.f32.mrb[0].mxu0
    %v530 = vadd.f32 0.0, %v529
    %v531 = vpop.f32.mrb[0].mxu0
    %532 = vmatprep.mubr.bf16.mxu0 0
    %533 = vmatmul.mubr.bf16.gmra.mrb[0].mxu0 %v326
    %v534 = vpop.f32.mrb[0].mxu0
    %v535 = vadd.f32 0.0, %v534
    %v536 = vpop.f32.mrb[0].mxu0
    %v537 = vpop.f32.mrb[0].mxu0
    %v538 = vadd.f32 0.0, %v537
    %v539 = vpop.f32.mrb[0].mxu0
    %540 = vmatprep.mubr.bf16.mxu0 0
    %541 = vmatmul.mubr.bf16.gmra.mrb[0].mxu0 %v329
    %v542 = vpop.f32.mrb[0].mxu0
    %v543 = vadd.f32 0.0, %v542
    %v544 = vpop.f32.mrb[0].mxu0
    %v545 = vpop.f32.mrb[0].mxu0
    %v546 = vadd.f32 0.0, %v545
    %v547 = vpop.f32.mrb[0].mxu0
    %548 = vmatprep.mubr.bf16.mxu0 0
    %549 = vmatmul.mubr.bf16.gmra.mrb[0].mxu0 %v332
    %v550 = vpop.f32.mrb[0].mxu0
    %v551 = vadd.f32 0.0, %v550
    %v552 = vpop.f32.mrb[0].mxu0
    %v553 = vpop.f32.mrb[0].mxu0
    %v554 = vadd.f32 0.0, %v553
    %v555 = vpop.f32.mrb[0].mxu0
    %556 = vmatprep.mubr.bf16.mxu0 0
    %557 = vmatmul.mubr.bf16.gmra.mrb[0].mxu0 %v335
    %v558 = vpop.f32.mrb[0].mxu0
    %v559 = vadd.f32 0.0, %v558
    %v560 = vpop.f32.mrb[0].mxu0
    %v561 = vpop.f32.mrb[0].mxu0
    %v562 = vadd.f32 0.0, %v561
    %v563 = vpop.f32.mrb[0].mxu0
    %564 = vmatprep.mubr.bf16.mxu0 0
    %565 = vmatmul.mubr.bf16.gmra.mrb[0].mxu0 %v338
    %v566 = vpop.f32.mrb[0].mxu0
    %v567 = vadd.f32 0.0, %v566
    %v568 = vpop.f32.mrb[0].mxu0
    %v569 = vpop.f32.mrb[0].mxu0
    %v570 = vadd.f32 0.0, %v569
    %v571 = vpop.f32.mrb[0].mxu0
    %572 = vmatprep.mubr.bf16.mxu0 0
    %573 = vmatmul.mubr.bf16.gmra.mrb[0].mxu0 %v341
    %v574 = vpop.f32.mrb[0].mxu0
    %v575 = vadd.f32 0.0, %v574
    %v576 = vpop.f32.mrb[0].mxu0
    %v577 = vpop.f32.mrb[0].mxu0
    %v578 = vadd.f32 0.0, %v577
    %v579 = vpop.f32.mrb[0].mxu0
    %580 = vmatprep.mubr.bf16.mxu0 0
    %581 = vmatmul.mubr.bf16.gmra.mrb[0].mxu0 %v344
    %v582 = vpop.f32.mrb[0].mxu0
    %v583 = vadd.f32 0.0, %v582
    %v584 = vpop.f32.mrb[0].mxu0
    %v585 = vpop.f32.mrb[0].mxu0
    %v586 = vadd.f32 0.0, %v585
    %v587 = vpop.f32.mrb[0].mxu0
    %588 = vmatprep.mubr.bf16.mxu0 0
    %589 = vmatmul.mubr.bf16.gmra.mrb[0].mxu0 %v347
    %v590 = vpop.f32.mrb[0].mxu0
    %v591 = vadd.f32 0.0, %v590
    %v592 = vpop.f32.mrb[0].mxu0
    %v593 = vpop.f32.mrb[0].mxu0
    %v594 = vadd.f32 0.0, %v593
    %v595 = vpop.f32.mrb[0].mxu0
    %596 = vmatprep.mubr.bf16.mxu0 0
    %597 = vmatmul.mubr.bf16.gmra.mrb[0].mxu0 %v350
    %v598 = vpop.f32.mrb[0].mxu0
    %v599 = vadd.f32 0.0, %v598
    %v600 = vpop.f32.mrb[0].mxu0
    %v601 = vpop.f32.mrb[0].mxu0
    %v602 = vadd.f32 0.0, %v601
    %v603 = vpop.f32.mrb[0].mxu0
    %604 = vmatprep.mubr.bf16.mxu0 0
    %605 = vmatmul.mubr.bf16.gmra.mrb[0].mxu0 %v353
    %v606 = vpop.f32.mrb[0].mxu0
    %v607 = vadd.f32 0.0, %v606
    %v608 = vpop.f32.mrb[0].mxu0
    %v609 = vpop.f32.mrb[0].mxu0
    %v610 = vadd.f32 0.0, %v609
    %v611 = vpop.f32.mrb[0].mxu0
    %612 = vmatprep.mubr.bf16.mxu0 0
    %613 = vmatmul.mubr.bf16.gmra.mrb[0].mxu0 %v356
    %v614 = vpop.f32.mrb[0].mxu0
    %v615 = vadd.f32 0.0, %v614
    %v616 = vpop.f32.mrb[0].mxu0
    %v617 = vpop.f32.mrb[0].mxu0
    %v618 = vadd.f32 0.0, %v617
    %v619 = vpop.f32.mrb[0].mxu0
    %620 = vmatprep.mubr.bf16.mxu0 0
    %621 = vmatmul.mubr.bf16.gmra.mrb[0].mxu0 %v359
    %v622 = vpop.f32.mrb[0].mxu0
    %v623 = vadd.f32 0.0, %v622
    %v624 = vpop.f32.mrb[0].mxu0
    %v625 = vpop.f32.mrb[0].mxu0
    %v626 = vadd.f32 0.0, %v625
    %v627 = vpop.f32.mrb[0].mxu0
    %628 = vmatprep.mubr.bf16.mxu0 0
    %629 = vmatmul.mubr.bf16.gmra.mrb[0].mxu0 %v362
    %v630 = vpop.f32.mrb[0].mxu0
    %v631 = vadd.f32 0.0, %v630
    %v632 = vpop.f32.mrb[0].mxu0
    %v633 = vpop.f32.mrb[0].mxu0
    %v634 = vadd.f32 0.0, %v633
    %v635 = vpop.f32.mrb[0].mxu0
    %636 = vmatprep.mubr.bf16.mxu0 0
    %637 = vmatmul.mubr.bf16.gmra.mrb[0].mxu0 %v365
    %v638 = vpop.f32.mrb[0].mxu0
    %v639 = vadd.f32 0.0, %v638
    %v640 = vpop.f32.mrb[0].mxu0
    %v641 = vpop.f32.mrb[0].mxu0
    %v642 = vadd.f32 0.0, %v641
    %v643 = vpop.f32.mrb[0].mxu0
    %644 = vmatprep.mubr.bf16.mxu0 0
    %645 = vmatmul.mubr.bf16.gmra.mrb[0].mxu0 %v368
    %v646 = vpop.f32.mrb[0].mxu0
    %v647 = vadd.f32 0.0, %v646
    %v648 = vpop.f32.mrb[0].mxu0
    %v649 = vpop.f32.mrb[0].mxu0
    %v650 = vadd.f32 0.0, %v649
    %v651 = vpop.f32.mrb[0].mxu0
    %652 = vmatprep.mubr.bf16.mxu0 0
    %653 = vmatmul.mubr.bf16.gmra.mrb[0].mxu0 %v371
    %v654 = vpop.f32.mrb[0].mxu0
    %v655 = vadd.f32 0.0, %v654
    %v656 = vpop.f32.mrb[0].mxu0
    %v657 = vpop.f32.mrb[0].mxu0
    %v658 = vadd.f32 0.0, %v657
    %v659 = vpop.f32.mrb[0].mxu0
    %660 = vmatprep.mubr.bf16.mxu0 0
    %661 = vmatmul.mubr.bf16.gmra.mrb[0].mxu0 %v374
    %v662 = vpop.f32.mrb[0].mxu0
    %v663 = vadd.f32 0.0, %v662
    %v664 = vpop.f32.mrb[0].mxu0
    %v665 = vpop.f32.mrb[0].mxu0
    %v666 = vadd.f32 0.0, %v665
    %v667 = vpop.f32.mrb[0].mxu0
    %668 = vdwg.mxu0
    %v669 = vld [vmem:[%s2] sm:$0x1]
    %v671 = vlaneseq
    %v672 = vshrl.u32 %v671, 7
    %v673 = vsub.s32 0, %v672
    %v674 = vrot.slane %v669, %v673
    %v676 = vmul.f32 %v415, %v674
    %v677 = vmul.f32 %v418, %v674
    %v678 = vmul.f32 %v423, %v674
    %v679 = vmul.f32 %v426, %v674
    %v680 = vmul.f32 %v431, %v674
    %v681 = vmul.f32 %v434, %v674
    %v682 = vmul.f32 %v439, %v674
    %v683 = vmul.f32 %v442, %v674
    %v684 = vmul.f32 %v447, %v674
    %v685 = vmul.f32 %v450, %v674
    %v686 = vmul.f32 %v455, %v674
    %v687 = vmul.f32 %v458, %v674
    %v688 = vmul.f32 %v463, %v674
    %v689 = vmul.f32 %v466, %v674
    %v690 = vmul.f32 %v471, %v674
    %v691 = vmul.f32 %v474, %v674
    %v692 = vmul.f32 %v479, %v674
    %v693 = vmul.f32 %v482, %v674
    %v694 = vmul.f32 %v487, %v674
    %v695 = vmul.f32 %v490, %v674
    %v696 = vmul.f32 %v495, %v674
    %v697 = vmul.f32 %v498, %v674
    %v698 = vmul.f32 %v503, %v674
    %v699 = vmul.f32 %v506, %v674
    %v700 = vmul.f32 %v511, %v674
    %v701 = vmul.f32 %v514, %v674
    %v702 = vmul.f32 %v519, %v674
    %v703 = vmul.f32 %v522, %v674
    %v704 = vmul.f32 %v527, %v674
    %v705 = vmul.f32 %v530, %v674
    %v706 = vmul.f32 %v535, %v674
    %v707 = vmul.f32 %v538, %v674
    %v708 = vmul.f32 %v543, %v674
    %v709 = vmul.f32 %v546, %v674
    %v710 = vmul.f32 %v551, %v674
    %v711 = vmul.f32 %v554, %v674
    %v712 = vmul.f32 %v559, %v674
    %v713 = vmul.f32 %v562, %v674
    %v714 = vmul.f32 %v567, %v674
    %v715 = vmul.f32 %v570, %v674
    %v716 = vmul.f32 %v575, %v674
    %v717 = vmul.f32 %v578, %v674
    %v718 = vmul.f32 %v583, %v674
    %v719 = vmul.f32 %v586, %v674
    %v720 = vmul.f32 %v591, %v674
    %v721 = vmul.f32 %v594, %v674
    %v722 = vmul.f32 %v599, %v674
    %v723 = vmul.f32 %v602, %v674
    %v724 = vmul.f32 %v607, %v674
    %v725 = vmul.f32 %v610, %v674
    %v726 = vmul.f32 %v615, %v674
    %v727 = vmul.f32 %v618, %v674
    %v728 = vmul.f32 %v623, %v674
    %v729 = vmul.f32 %v626, %v674
    %v730 = vmul.f32 %v631, %v674
    %v731 = vmul.f32 %v634, %v674
    %v732 = vmul.f32 %v639, %v674
    %v733 = vmul.f32 %v642, %v674
    %v734 = vmul.f32 %v647, %v674
    %v735 = vmul.f32 %v650, %v674
    %v736 = vmul.f32 %v655, %v674
    %v737 = vmul.f32 %v658, %v674
    %v738 = vmul.f32 %v663, %v674
    %v739 = vmul.f32 %v666, %v674
    %v740 = vld [vmem:[%s3] sm:$0x1]
    %v742 = vlaneseq
    %v743 = vshrl.u32 %v742, 7
    %v744 = vsub.s32 0, %v743
    %v745 = vrot.slane %v740, %v744
    %v747 = vadd.f32 %v676, %v745
    %v748 = vadd.f32 %v677, %v745
    %v749 = vadd.f32 %v678, %v745
    %v750 = vadd.f32 %v679, %v745
    %v751 = vadd.f32 %v680, %v745
    %v752 = vadd.f32 %v681, %v745
    %v753 = vadd.f32 %v682, %v745
    %v754 = vadd.f32 %v683, %v745
    %v755 = vadd.f32 %v684, %v745
    %v756 = vadd.f32 %v685, %v745
    %v757 = vadd.f32 %v686, %v745
    %v758 = vadd.f32 %v687, %v745
    %v759 = vadd.f32 %v688, %v745
    %v760 = vadd.f32 %v689, %v745
    %v761 = vadd.f32 %v690, %v745
    %v762 = vadd.f32 %v691, %v745
    %v763 = vadd.f32 %v692, %v745
    %v764 = vadd.f32 %v693, %v745
    %v765 = vadd.f32 %v694, %v745
    %v766 = vadd.f32 %v695, %v745
    %v767 = vadd.f32 %v696, %v745
    %v768 = vadd.f32 %v697, %v745
    %v769 = vadd.f32 %v698, %v745
    %v770 = vadd.f32 %v699, %v745
    %v771 = vadd.f32 %v700, %v745
    %v772 = vadd.f32 %v701, %v745
    %v773 = vadd.f32 %v702, %v745
    %v774 = vadd.f32 %v703, %v745
    %v775 = vadd.f32 %v704, %v745
    %v776 = vadd.f32 %v705, %v745
    %v777 = vadd.f32 %v706, %v745
    %v778 = vadd.f32 %v707, %v745
    %v779 = vadd.f32 %v708, %v745
    %v780 = vadd.f32 %v709, %v745
    %v781 = vadd.f32 %v710, %v745
    %v782 = vadd.f32 %v711, %v745
    %v783 = vadd.f32 %v712, %v745
    %v784 = vadd.f32 %v713, %v745
    %v785 = vadd.f32 %v714, %v745
    %v786 = vadd.f32 %v715, %v745
    %v787 = vadd.f32 %v716, %v745
    %v788 = vadd.f32 %v717, %v745
    %v789 = vadd.f32 %v718, %v745
    %v790 = vadd.f32 %v719, %v745
    %v791 = vadd.f32 %v720, %v745
    %v792 = vadd.f32 %v721, %v745
    %v793 = vadd.f32 %v722, %v745
    %v794 = vadd.f32 %v723, %v745
    %v795 = vadd.f32 %v724, %v745
    %v796 = vadd.f32 %v725, %v745
    %v797 = vadd.f32 %v726, %v745
    %v798 = vadd.f32 %v727, %v745
    %v799 = vadd.f32 %v728, %v745
    %v800 = vadd.f32 %v729, %v745
    %v801 = vadd.f32 %v730, %v745
    %v802 = vadd.f32 %v731, %v745
    %v803 = vadd.f32 %v732, %v745
    %v804 = vadd.f32 %v733, %v745
    %v805 = vadd.f32 %v734, %v745
    %v806 = vadd.f32 %v735, %v745
    %v807 = vadd.f32 %v736, %v745
    %v808 = vadd.f32 %v737, %v745
    %v809 = vadd.f32 %v738, %v745
    %v810 = vadd.f32 %v739, %v745
    %v811 = vmax.f32 %v747, 0.0
    %v812 = vmax.f32 %v748, 0.0
    %v813 = vmax.f32 %v749, 0.0
    %v814 = vmax.f32 %v750, 0.0
    %v815 = vmax.f32 %v751, 0.0
    %v816 = vmax.f32 %v752, 0.0
    %v817 = vmax.f32 %v753, 0.0
    %v818 = vmax.f32 %v754, 0.0
    %v819 = vmax.f32 %v755, 0.0
    %v820 = vmax.f32 %v756, 0.0
    %v821 = vmax.f32 %v757, 0.0
    %v822 = vmax.f32 %v758, 0.0
    %v823 = vmax.f32 %v759, 0.0
    %v824 = vmax.f32 %v760, 0.0
    %v825 = vmax.f32 %v761, 0.0
    %v826 = vmax.f32 %v762, 0.0
    %v827 = vmax.f32 %v763, 0.0
    %v828 = vmax.f32 %v764, 0.0
    %v829 = vmax.f32 %v765, 0.0
    %v830 = vmax.f32 %v766, 0.0
    %v831 = vmax.f32 %v767, 0.0
    %v832 = vmax.f32 %v768, 0.0
    %v833 = vmax.f32 %v769, 0.0
    %v834 = vmax.f32 %v770, 0.0
    %v835 = vmax.f32 %v771, 0.0
    %v836 = vmax.f32 %v772, 0.0
    %v837 = vmax.f32 %v773, 0.0
    %v838 = vmax.f32 %v774, 0.0
    %v839 = vmax.f32 %v775, 0.0
    %v840 = vmax.f32 %v776, 0.0
    %v841 = vmax.f32 %v777, 0.0
    %v842 = vmax.f32 %v778, 0.0
    %v843 = vmax.f32 %v779, 0.0
    %v844 = vmax.f32 %v780, 0.0
    %v845 = vmax.f32 %v781, 0.0
    %v846 = vmax.f32 %v782, 0.0
    %v847 = vmax.f32 %v783, 0.0
    %v848 = vmax.f32 %v784, 0.0
    %v849 = vmax.f32 %v785, 0.0
    %v850 = vmax.f32 %v786, 0.0
    %v851 = vmax.f32 %v787, 0.0
    %v852 = vmax.f32 %v788, 0.0
    %v853 = vmax.f32 %v789, 0.0
    %v854 = vmax.f32 %v790, 0.0
    %v855 = vmax.f32 %v791, 0.0
    %v856 = vmax.f32 %v792, 0.0
    %v857 = vmax.f32 %v793, 0.0
    %v858 = vmax.f32 %v794, 0.0
    %v859 = vmax.f32 %v795, 0.0
    %v860 = vmax.f32 %v796, 0.0
    %v861 = vmax.f32 %v797, 0.0
    %v862 = vmax.f32 %v798, 0.0
    %v863 = vmax.f32 %v799, 0.0
    %v864 = vmax.f32 %v800, 0.0
    %v865 = vmax.f32 %v801, 0.0
    %v866 = vmax.f32 %v802, 0.0
    %v867 = vmax.f32 %v803, 0.0
    %v868 = vmax.f32 %v804, 0.0
    %v869 = vmax.f32 %v805, 0.0
    %v870 = vmax.f32 %v806, 0.0
    %v871 = vmax.f32 %v807, 0.0
    %v872 = vmax.f32 %v808, 0.0
    %v873 = vmax.f32 %v809, 0.0
    %v874 = vmax.f32 %v810, 0.0
    %v875 = vpack.c.bf16 %v812, %v811
    %v876 = vpack.c.bf16 %v814, %v813
    %v877 = vpack.c.bf16 %v816, %v815
    %v878 = vpack.c.bf16 %v818, %v817
    %v879 = vpack.c.bf16 %v820, %v819
    %v880 = vpack.c.bf16 %v822, %v821
    %v881 = vpack.c.bf16 %v824, %v823
    %v882 = vpack.c.bf16 %v826, %v825
    %v883 = vpack.c.bf16 %v828, %v827
    %v884 = vpack.c.bf16 %v830, %v829
    %v885 = vpack.c.bf16 %v832, %v831
    %v886 = vpack.c.bf16 %v834, %v833
    %v887 = vpack.c.bf16 %v836, %v835
    %v888 = vpack.c.bf16 %v838, %v837
    %v889 = vpack.c.bf16 %v840, %v839
    %v890 = vpack.c.bf16 %v842, %v841
    %v891 = vpack.c.bf16 %v844, %v843
    %v892 = vpack.c.bf16 %v846, %v845
    %v893 = vpack.c.bf16 %v848, %v847
    %v894 = vpack.c.bf16 %v850, %v849
    %v895 = vpack.c.bf16 %v852, %v851
    %v896 = vpack.c.bf16 %v854, %v853
    %v897 = vpack.c.bf16 %v856, %v855
    %v898 = vpack.c.bf16 %v858, %v857
    %v899 = vpack.c.bf16 %v860, %v859
    %v900 = vpack.c.bf16 %v862, %v861
    %v901 = vpack.c.bf16 %v864, %v863
    %v902 = vpack.c.bf16 %v866, %v865
    %v903 = vpack.c.bf16 %v868, %v867
    %v904 = vpack.c.bf16 %v870, %v869
    %v905 = vpack.c.bf16 %v872, %v871
    %v906 = vpack.c.bf16 %v874, %v873
    %v939 = vunpack.c.l.b16 %v875
    %v940 = vunpack.c.h.b16 %v875
    %v941 = vunpack.c.l.b16 %v876
    %v942 = vunpack.c.h.b16 %v876
    %v943 = vunpack.c.l.b16 %v877
    %v944 = vunpack.c.h.b16 %v877
    %v945 = vunpack.c.l.b16 %v878
    %v946 = vunpack.c.h.b16 %v878
    %v947 = vunpack.c.l.b16 %v879
    %v948 = vunpack.c.h.b16 %v879
    %v949 = vunpack.c.l.b16 %v880
    %v950 = vunpack.c.h.b16 %v880
    %v951 = vunpack.c.l.b16 %v881
    %v952 = vunpack.c.h.b16 %v881
    %v953 = vunpack.c.l.b16 %v882
    %v954 = vunpack.c.h.b16 %v882
    %v955 = vunpack.c.l.b16 %v883
    %v956 = vunpack.c.h.b16 %v883
    %v957 = vunpack.c.l.b16 %v884
    %v958 = vunpack.c.h.b16 %v884
    %v959 = vunpack.c.l.b16 %v885
    %v960 = vunpack.c.h.b16 %v885
    %v961 = vunpack.c.l.b16 %v886
    %v962 = vunpack.c.h.b16 %v886
    %v963 = vunpack.c.l.b16 %v887
    %v964 = vunpack.c.h.b16 %v887
    %v965 = vunpack.c.l.b16 %v888
    %v966 = vunpack.c.h.b16 %v888
    %v967 = vunpack.c.l.b16 %v889
    %v968 = vunpack.c.h.b16 %v889
    %v969 = vunpack.c.l.b16 %v890
    %v970 = vunpack.c.h.b16 %v890
    %v971 = vunpack.c.l.b16 %v891
    %v972 = vunpack.c.h.b16 %v891
    %v973 = vunpack.c.l.b16 %v892
    %v974 = vunpack.c.h.b16 %v892
    %v975 = vunpack.c.l.b16 %v893
    %v976 = vunpack.c.h.b16 %v893
    %v977 = vunpack.c.l.b16 %v894
    %v978 = vunpack.c.h.b16 %v894
    %v979 = vunpack.c.l.b16 %v895
    %v980 = vunpack.c.h.b16 %v895
    %v981 = vunpack.c.l.b16 %v896
    %v982 = vunpack.c.h.b16 %v896
    %v983 = vunpack.c.l.b16 %v897
    %v984 = vunpack.c.h.b16 %v897
    %v985 = vunpack.c.l.b16 %v898
    %v986 = vunpack.c.h.b16 %v898
    %v987 = vunpack.c.l.b16 %v899
    %v988 = vunpack.c.h.b16 %v899
    %v989 = vunpack.c.l.b16 %v900
    %v990 = vunpack.c.h.b16 %v900
    %v991 = vunpack.c.l.b16 %v901
    %v992 = vunpack.c.h.b16 %v901
    %v993 = vunpack.c.l.b16 %v902
    %v994 = vunpack.c.h.b16 %v902
    %v995 = vunpack.c.l.b16 %v903
    %v996 = vunpack.c.h.b16 %v903
    %v997 = vunpack.c.l.b16 %v904
    %v998 = vunpack.c.h.b16 %v904
    %v999 = vunpack.c.l.b16 %v905
    %v1000 = vunpack.c.h.b16 %v905
    %v1001 = vunpack.c.l.b16 %v906
    %v1002 = vunpack.c.h.b16 %v906
    %v1003 = vpack.c.b16 %v939, %v939
    %v1004 = vpack.c.b16 %v940, %v940
    %v1005 = vpack.c.b16 %v941, %v941
    %v1006 = vpack.c.b16 %v942, %v942
    %v1007 = vpack.c.b16 %v943, %v943
    %v1008 = vpack.c.b16 %v944, %v944
    %v1009 = vpack.c.b16 %v945, %v945
    %v1010 = vpack.c.b16 %v946, %v946
    %v1011 = vpack.c.b16 %v947, %v947
    %v1012 = vpack.c.b16 %v948, %v948
    %v1013 = vpack.c.b16 %v949, %v949
    %v1014 = vpack.c.b16 %v950, %v950
    %v1015 = vpack.c.b16 %v951, %v951
    %v1016 = vpack.c.b16 %v952, %v952
    %v1017 = vpack.c.b16 %v953, %v953
    %v1018 = vpack.c.b16 %v954, %v954
    %v1019 = vpack.c.b16 %v955, %v955
    %v1020 = vpack.c.b16 %v956, %v956
    %v1021 = vpack.c.b16 %v957, %v957
    %v1022 = vpack.c.b16 %v958, %v958
    %v1023 = vpack.c.b16 %v959, %v959
    %v1024 = vpack.c.b16 %v960, %v960
    %v1025 = vpack.c.b16 %v961, %v961
    %v1026 = vpack.c.b16 %v962, %v962
    %v1027 = vpack.c.b16 %v963, %v963
    %v1028 = vpack.c.b16 %v964, %v964
    %v1029 = vpack.c.b16 %v965, %v965
    %v1030 = vpack.c.b16 %v966, %v966
    %v1031 = vpack.c.b16 %v967, %v967
    %v1032 = vpack.c.b16 %v968, %v968
    %v1033 = vpack.c.b16 %v969, %v969
    %v1034 = vpack.c.b16 %v970, %v970
    %v1035 = vpack.c.b16 %v971, %v971
    %v1036 = vpack.c.b16 %v972, %v972
    %v1037 = vpack.c.b16 %v973, %v973
    %v1038 = vpack.c.b16 %v974, %v974
    %v1039 = vpack.c.b16 %v975, %v975
    %v1040 = vpack.c.b16 %v976, %v976
    %v1041 = vpack.c.b16 %v977, %v977
    %v1042 = vpack.c.b16 %v978, %v978
    %v1043 = vpack.c.b16 %v979, %v979
    %v1044 = vpack.c.b16 %v980, %v980
    %v1045 = vpack.c.b16 %v981, %v981
    %v1046 = vpack.c.b16 %v982, %v982
    %v1047 = vpack.c.b16 %v983, %v983
    %v1048 = vpack.c.b16 %v984, %v984
    %v1049 = vpack.c.b16 %v985, %v985
    %v1050 = vpack.c.b16 %v986, %v986
    %v1051 = vpack.c.b16 %v987, %v987
    %v1052 = vpack.c.b16 %v988, %v988
    %v1053 = vpack.c.b16 %v989, %v989
    %v1054 = vpack.c.b16 %v990, %v990
    %v1055 = vpack.c.b16 %v991, %v991
    %v1056 = vpack.c.b16 %v992, %v992
    %v1057 = vpack.c.b16 %v993, %v993
    %v1058 = vpack.c.b16 %v994, %v994
    %v1059 = vpack.c.b16 %v995, %v995
    %v1060 = vpack.c.b16 %v996, %v996
    %v1061 = vpack.c.b16 %v997, %v997
    %v1062 = vpack.c.b16 %v998, %v998
    %v1063 = vpack.c.b16 %v999, %v999
    %v1064 = vpack.c.b16 %v1000, %v1000
    %v1065 = vpack.c.b16 %v1001, %v1001
    %v1066 = vpack.c.b16 %v1002, %v1002
    %1131 = vst [vmem:[#allocation2] sm:$0xf] %v1003
    %1132 = vst [vmem:[#allocation2 + $0x4] sm:$0xf] %v1004
    %1133 = vst [vmem:[#allocation2 + $0x8] sm:$0xf] %v1005
    %1134 = vst [vmem:[#allocation2 + $0xc] sm:$0xf] %v1006
    %1135 = vst [vmem:[#allocation2 + $0x10] sm:$0xf] %v1007
    %1136 = vst [vmem:[#allocation2 + $0x14] sm:$0xf] %v1008
    %1137 = vst [vmem:[#allocation2 + $0x18] sm:$0xf] %v1009
    %1138 = vst [vmem:[#allocation2 + $0x1c] sm:$0xf] %v1010
    %1139 = vst [vmem:[#allocation2 + $0x20] sm:$0xf] %v1011
    %1140 = vst [vmem:[#allocation2 + $0x24] sm:$0xf] %v1012
    %1141 = vst [vmem:[#allocation2 + $0x28] sm:$0xf] %v1013
    %1142 = vst [vmem:[#allocation2 + $0x2c] sm:$0xf] %v1014
    %1143 = vst [vmem:[#allocation2 + $0x30] sm:$0xf] %v1015
    %1144 = vst [vmem:[#allocation2 + $0x34] sm:$0xf] %v1016
    %1145 = vst [vmem:[#allocation2 + $0x38] sm:$0xf] %v1017
    %1146 = vst [vmem:[#allocation2 + $0x3c] sm:$0xf] %v1018
    %1147 = vst [vmem:[#allocation2 + $0x40] sm:$0xf] %v1019
    %1148 = vst [vmem:[#allocation2 + $0x44] sm:$0xf] %v1020
    %1149 = vst [vmem:[#allocation2 + $0x48] sm:$0xf] %v1021
    %1150 = vst [vmem:[#allocation2 + $0x4c] sm:$0xf] %v1022
    %1151 = vst [vmem:[#allocation2 + $0x50] sm:$0xf] %v1023
    %1152 = vst [vmem:[#allocation2 + $0x54] sm:$0xf] %v1024
    %1153 = vst [vmem:[#allocation2 + $0x58] sm:$0xf] %v1025
    %1154 = vst [vmem:[#allocation2 + $0x5c] sm:$0xf] %v1026
    %1155 = vst [vmem:[#allocation2 + $0x60] sm:$0xf] %v1027
    %1156 = vst [vmem:[#allocation2 + $0x64] sm:$0xf] %v1028
    %1157 = vst [vmem:[#allocation2 + $0x68] sm:$0xf] %v1029
    %1158 = vst [vmem:[#allocation2 + $0x6c] sm:$0xf] %v1030
    %1159 = vst [vmem:[#allocation2 + $0x70] sm:$0xf] %v1031
    %1160 = vst [vmem:[#allocation2 + $0x74] sm:$0xf] %v1032
    %1161 = vst [vmem:[#allocation2 + $0x78] sm:$0xf] %v1033
    %1162 = vst [vmem:[#allocation2 + $0x7c] sm:$0xf] %v1034
    %1163 = vst [vmem:[#allocation2 + $0x80] sm:$0xf] %v1035
    %1164 = vst [vmem:[#allocation2 + $0x84] sm:$0xf] %v1036
    %1165 = vst [vmem:[#allocation2 + $0x88] sm:$0xf] %v1037
    %1166 = vst [vmem:[#allocation2 + $0x8c] sm:$0xf] %v1038
    %1167 = vst [vmem:[#allocation2 + $0x90] sm:$0xf] %v1039
    %1168 = vst [vmem:[#allocation2 + $0x94] sm:$0xf] %v1040
    %1169 = vst [vmem:[#allocation2 + $0x98] sm:$0xf] %v1041
    %1170 = vst [vmem:[#allocation2 + $0x9c] sm:$0xf] %v1042
    %1171 = vst [vmem:[#allocation2 + $0xa0] sm:$0xf] %v1043
    %1172 = vst [vmem:[#allocation2 + $0xa4] sm:$0xf] %v1044
    %1173 = vst [vmem:[#allocation2 + $0xa8] sm:$0xf] %v1045
    %1174 = vst [vmem:[#allocation2 + $0xac] sm:$0xf] %v1046
    %1175 = vst [vmem:[#allocation2 + $0xb0] sm:$0xf] %v1047
    %1176 = vst [vmem:[#allocation2 + $0xb4] sm:$0xf] %v1048
    %1177 = vst [vmem:[#allocation2 + $0xb8] sm:$0xf] %v1049
    %1178 = vst [vmem:[#allocation2 + $0xbc] sm:$0xf] %v1050
    %1179 = vst [vmem:[#allocation2 + $0xc0] sm:$0xf] %v1051
    %1180 = vst [vmem:[#allocation2 + $0xc4] sm:$0xf] %v1052
    %1181 = vst [vmem:[#allocation2 + $0xc8] sm:$0xf] %v1053
    %1182 = vst [vmem:[#allocation2 + $0xcc] sm:$0xf] %v1054
    %1183 = vst [vmem:[#allocation2 + $0xd0] sm:$0xf] %v1055
    %1184 = vst [vmem:[#allocation2 + $0xd4] sm:$0xf] %v1056
    %1185 = vst [vmem:[#allocation2 + $0xd8] sm:$0xf] %v1057
    %1186 = vst [vmem:[#allocation2 + $0xdc] sm:$0xf] %v1058
    %1187 = vst [vmem:[#allocation2 + $0xe0] sm:$0xf] %v1059
    %1188 = vst [vmem:[#allocation2 + $0xe4] sm:$0xf] %v1060
    %1189 = vst [vmem:[#allocation2 + $0xe8] sm:$0xf] %v1061
    %1190 = vst [vmem:[#allocation2 + $0xec] sm:$0xf] %v1062
    %1191 = vst [vmem:[#allocation2 + $0xf0] sm:$0xf] %v1063
    %1192 = vst [vmem:[#allocation2 + $0xf4] sm:$0xf] %v1064
    %1193 = vst [vmem:[#allocation2 + $0xf8] sm:$0xf] %v1065
    %1194 = vst [vmem:[#allocation2 + $0xfc] sm:$0xf] %v1066
    // Predicated region
    $region18: #{tpu_custom_call.1} parent=1 // pred_check
      _
    $region19: #{tpu_custom_call.1} parent=1 // pred_check_branch
      %1196 = sbr.rel (0) target = $region21
    $region20: #{tpu_custom_call.1} parent=1 // pred_region
      %s1198 = ssub.s32 4096, 4096
      %1199 = vsyncadd [#allocation3], %s1198
      %s1200 = sshll.u32 [#allocation2], 4
      %s1201 = int_to_ptr.vmem [resolvable:$true] %s1200
      %1206 = dma.vmem_to_hbm [thread:$0]  %s1201, 4096, %s4, [#allocation3], 64, 64, 4
    $region21: #{tpu_custom_call.1} parent=1 // pred_fallthru
      _
    // Predicated region
    $region22: #{tpu_custom_call.1} parent=1 // pred_check
      _
    $region23: #{tpu_custom_call.1} parent=1 // pred_check_branch
      %1208 = sbr.rel (0) target = $region25
    $region24: #{tpu_custom_call.1} parent=1 // pred_region
      %1209 = dma.done [#allocation3], 4096
    $region25: #{tpu_custom_call.1} parent=1 // pred_fallthru
      _
    %1210 = vsyncpa [#allocation3], 1

</llo_original>
